<compile_context>
chip_gen: v5e
topology: v5e:2x2
jax: 0.10.0
libtpu: 0.0.40
codegen_flags: <defaults>
</compile_context>

<pallas_src>
import jax
import jax.numpy as jnp
from jax.experimental import pallas as pl
from jax.experimental.pallas import tpu as pltpu


def _round_up(x, m):
    return ((x + m - 1) // m) * m


def hard_voting_kernel(txt_ref, vis_ref, wvis_ref, whead_ref, bhead_ref, out_ref):
    """Per batch tile: two bf16 MXU matmuls (f32 acc), argmax, one-hot store."""
    Bt, Cp = out_ref.shape

    # ---- visual branch: pooled (Bt, Kp) bf16 @ fused [Wv; Wp] (Kp, H) bf16 ----
    vis_pool = jnp.dot(vis_ref[...], wvis_ref[...],
                       preferred_element_type=jnp.float32)            # (Bt, H) f32

    # text pool was computed with exact f32 division in the wrapper; upcast + add.
    feats = vis_pool + txt_ref[...].astype(jnp.float32)               # (Bt, H) f32

    # ---- single classifier head ----
    # NOTE: the original module also runs a second (VG) head, but
    # torch.where(preds_vqa == preds_vg, preds_vqa, preds_vqa) == preds_vqa,
    # so the VG logits never influence the output; they are omitted here.
    # bf16 MXU operands perturb logits by ~2^-8 relative; a near-tie between
    # classes could flip the argmax vs. an exact-f32 reference (documented).
    logits = jnp.dot(feats.astype(jnp.bfloat16), whead_ref[...],
                     preferred_element_type=jnp.float32) + bhead_ref[...]  # (Bt, Cp)
    # padded classes carry bias = -1e30 (finite: no inf/nan hazards) and can
    # never win the argmax.

    # ---- argmax over classes (first maximal index) via iota + lane reductions ----
    cls_iota = jax.lax.broadcasted_iota(jnp.int32, (Bt, Cp), 1)
    max_l = jnp.max(logits, axis=1, keepdims=True)
    preds = jnp.min(jnp.where(logits == max_l, cls_iota, Cp),
                    axis=1, keepdims=True)                             # (Bt, 1)

    # ---- scatter_(1, preds, 1.0) == one-hot over the (padded) class axis ----
    # 0.0 / 1.0 are exact in bf16, so a bf16 store halves the output writeback.
    out_ref[...] = jnp.where(cls_iota == preds, 1.0, 0.0).astype(out_ref.dtype)


def hard_voting_forward(params, input_ids, attention_mask, token_type_ids,
                        visual_feats, visual_pos):
    # ---- glue that stays in plain JAX: embedding gathers + linear pre-pools ----
    # TODO(synk): the full LXMERT cross-modal transformer encoder is external to
    # the module source; it is replaced by this synthetic pooled-linear head.
    txt_emb = (params["tok_emb"][input_ids] +
               params["type_emb"][token_type_ids]).astype(jnp.float32)
    mask = attention_mask.astype(jnp.float32)

    B, T = input_ids.shape
    H = txt_emb.shape[-1]
    Dv = visual_feats.shape[-1]
    Dp = visual_pos.shape[-1]
    C = params["w_vqa"].shape[1]

    # Exact masked-mean text pool (hoisted): removes the (B,T,H) text DMA and the
    # in-kernel mask relayout / approx reciprocal.
    cnt = jnp.maximum(jnp.sum(mask, axis=1, keepdims=True), 1.0)        # (B, 1)
    txt_pool = jnp.sum(txt_emb * mask[:, :, None], axis=1) / cnt        # (B, H) f32

    # Visual mean-pool hoisted (linearity: mean-then-project == project-then-mean),
    # then the two projections are fused into ONE matmul by concatenating
    # [mean(vfeat) | mean(vpos)] along K and [Wv ; Wp] along K (K padded to x16).
    K = Dv + Dp
    Kp = _round_up(K, 16)
    vis_mean = jnp.concatenate(
        [jnp.mean(visual_feats.astype(jnp.float32), axis=1),
         jnp.mean(visual_pos.astype(jnp.float32), axis=1),
         jnp.zeros((B, Kp - K), jnp.float32)], axis=-1)                 # (B, Kp)
    w_vis = jnp.concatenate(
        [params["w_vis"], params["w_pos"],
         jnp.zeros((Kp - K, H), jnp.float32)], axis=0)                  # (Kp, H)

    # Lane-dense class axis: pad C to a multiple of 128.  Weights pad with 0;
    # bias pads with a large finite negative so padded classes never win argmax.
    Cp = _round_up(C, 128)
    w_head = jnp.concatenate(
        [params["w_vqa"], jnp.zeros((H, Cp - C), jnp.float32)], axis=1)  # (H, Cp)
    b_head = jnp.concatenate(
        [params["b_vqa"], jnp.full((1, Cp - C), -1e30, jnp.float32)], axis=1)

    # Grid-invariant weights to bf16 at rest (half the HBM->VMEM DMA and VMEM
    # residency); the bias stays f32 (added to the f32 accumulator).
    w_vis = w_vis.astype(jnp.bfloat16)
    w_head = w_head.astype(jnp.bfloat16)

    # Batch tiling: x16 sublane-dense tile (bf16 activations), sized to fill the
    # MXU M dimension at scale; pad the batch so every block / store is dense.
    Bt = min(_round_up(B, 16), 256)
    B_pad = _round_up(B, Bt)
    grid = (B_pad // Bt,)
    # Once B_pad >= 2*Bt the "parallel" grid axis shards batch tiles across
    # v7x's two TensorCores; v5e/v6e (one TC) simply pipeline the steps.

    if B_pad != B:
        pad = B_pad - B
        txt_pool = jnp.concatenate(
            [txt_pool, jnp.zeros((pad, H), txt_pool.dtype)], axis=0)
        vis_mean = jnp.concatenate(
            [vis_mean, jnp.zeros((pad, Kp), vis_mean.dtype)], axis=0)

    # Activations at rest in bf16 (halves per-step activation DMA); the kernel
    # upcasts where f32 VPU math is wanted (v5e has no native bf16 VPU).
    txt_pool = txt_pool.astype(jnp.bfloat16)
    vis_mean = vis_mean.astype(jnp.bfloat16)

    # Explicit VMEM budget: 2x buffered activation/output blocks + 1x weights.
    act_bytes = 2 * (Bt * H + Bt * Kp) * 2
    out_bytes = 2 * Bt * Cp * 2
    wgt_bytes = (Kp * H + H * Cp) * 2 + Cp * 4
    vmem_limit = int(min(48 * 2**20,
                         max(2 * (act_bytes + out_bytes + wgt_bytes), 16 * 2**20)))

    weight_mode = pl.Buffered(buffer_count=1)   # grid-invariant: no double buffer

    out_padded = pl.pallas_call(
        hard_voting_kernel,
        out_shape=jax.ShapeDtypeStruct((B_pad, Cp), jnp.bfloat16),
        grid=grid,
        in_specs=[
            pl.BlockSpec((Bt, H), lambda i: (i, 0)),                 # pooled text
            pl.BlockSpec((Bt, Kp), lambda i: (i, 0)),                # pooled visual
            pl.BlockSpec((Kp, H), lambda i: (0, 0), pipeline_mode=weight_mode),
            pl.BlockSpec((H, Cp), lambda i: (0, 0), pipeline_mode=weight_mode),
            pl.BlockSpec((1, Cp), lambda i: (0, 0), pipeline_mode=weight_mode),
        ],
        out_specs=pl.BlockSpec((Bt, Cp), lambda i: (i, 0)),
        compiler_params=pltpu.CompilerParams(
            dimension_semantics=("parallel",),
            vmem_limit_bytes=vmem_limit),
    )(txt_pool, vis_mean, w_vis, w_head, b_head)

    # Slice off batch / class padding; return f32 like torch.zeros_like(logits).
    return out_padded[:B, :C].astype(jnp.float32)


def make_params(key, vocab=100, n_types=2, hidden=32, vdim=32, pdim=4, n_cls=16):
    ks = jax.random.split(key, 8)
    s = 0.02
    return {
        "tok_emb":  s * jax.random.normal(ks[0], (vocab, hidden), jnp.float32),
        "type_emb": s * jax.random.normal(ks[1], (n_types, hidden), jnp.float32),
        "w_vis":    s * jax.random.normal(ks[2], (vdim, hidden), jnp.float32),
        "w_pos":    s * jax.random.normal(ks[3], (pdim, hidden), jnp.float32),
        "w_vqa":    s * jax.random.normal(ks[4], (hidden, n_cls), jnp.float32),
        "b_vqa":    s * jax.random.normal(ks[5], (1, n_cls), jnp.float32),
        # VG head parameters kept for module fidelity; never used because
        # where(preds_vqa == preds_vg, preds_vqa, preds_vqa) == preds_vqa.
        "w_vg":     s * jax.random.normal(ks[6], (hidden, n_cls), jnp.float32),
        "b_vg":     s * jax.random.normal(ks[7], (1, n_cls), jnp.float32),
    }


if __name__ == "__main__":
    key = jax.random.PRNGKey(0)
    B, T, V, VDIM, PDIM, NCLS, VOCAB = 2, 8, 4, 32, 4, 16, 100

    kp, k1, k2, k3, k4 = jax.random.split(key, 5)
    params = make_params(kp, vocab=VOCAB, hidden=32, vdim=VDIM, pdim=PDIM,
                         n_cls=NCLS)

    input_ids = jax.random.randint(k1, (B, T), 0, VOCAB, dtype=jnp.int32)
    attention_mask = jnp.ones((B, T), dtype=jnp.int32)
    token_type_ids = jnp.zeros((B, T), dtype=jnp.int32)
    visual_feats = jax.random.normal(k2, (B, V, VDIM), jnp.float32)
    visual_pos = jax.random.uniform(k3, (B, V, PDIM), jnp.float32)

    out = hard_voting_forward(params, input_ids, attention_mask, token_type_ids,
                              visual_feats, visual_pos)
    out = jax.block_until_ready(out)

    # sanity: each row must be a one-hot vector of length NCLS
    assert out.shape == (B, NCLS)
    assert jnp.allclose(out.sum(axis=1), 1.0)
    assert jnp.all((out == 0.0) | (out == 1.0))
    print("KERNEL_OK")
</pallas_src>

<mosaic_0001>
module attributes {stable_mosaic.version = 11 : i64} {
  func.func @hard_voting_kernel(%arg0: i32, %arg1: memref<16x32xbf16, #tpu.memory_space<vmem>>, %arg2: memref<16x48xbf16, #tpu.memory_space<vmem>>, %arg3: memref<48x32xbf16, #tpu.memory_space<vmem>>, %arg4: memref<32x128xbf16, #tpu.memory_space<vmem>>, %arg5: memref<1x128xf32, #tpu.memory_space<vmem>>, %arg6: memref<16x128xbf16, #tpu.memory_space<vmem>>) attributes {dimension_semantics = [#tpu.dimension_semantics<parallel>], iteration_bounds = array<i64: 1>, scalar_prefetch = 0 : i64, scratch_operands = 0 : i64, tpu.core_type = #tpu.core_type<tc>, window_params = [{transform_indices = @transform_0, window_bounds = array<i64: 16, 32>}, {transform_indices = @transform_1, window_bounds = array<i64: 16, 48>}, {pipeline_mode = #tpu.pipeline_mode<synchronous>, transform_indices = @transform_2, window_bounds = array<i64: 48, 32>}, {pipeline_mode = #tpu.pipeline_mode<synchronous>, transform_indices = @transform_3, window_bounds = array<i64: 32, 128>}, {pipeline_mode = #tpu.pipeline_mode<synchronous>, transform_indices = @transform_4, window_bounds = array<i64: 1, 128>}, {transform_indices = @transform_5, window_bounds = array<i64: 16, 128>}]} {
    %c0 = arith.constant 0 : index
    %c0_0 = arith.constant 0 : index
    %0 = vector.load %arg2[%c0, %c0_0] : memref<16x48xbf16, #tpu.memory_space<vmem>>, vector<16x48xbf16>
    %c0_1 = arith.constant 0 : index
    %c0_2 = arith.constant 0 : index
    %1 = vector.load %arg3[%c0_1, %c0_2] : memref<48x32xbf16, #tpu.memory_space<vmem>>, vector<48x32xbf16>
    %cst = arith.constant dense<0.000000e+00> : vector<16x32xf32>
    %2 = tpu.matmul %0, %1, %cst {dimension_numbers = #tpu.dot_dimension_numbers<[1], [0], [0], [1], [0, 0, 1, 1], [], []>} : vector<16x48xbf16>, vector<48x32xbf16>, vector<16x32xf32> -> vector<16x32xf32>
    %c0_3 = arith.constant 0 : index
    %c0_4 = arith.constant 0 : index
    %3 = vector.load %arg1[%c0_3, %c0_4] : memref<16x32xbf16, #tpu.memory_space<vmem>>, vector<16x32xbf16>
    %4 = arith.extf %3 : vector<16x32xbf16> to vector<16x32xf32>
    %5 = arith.addf %2, %4 : vector<16x32xf32>
    %6 = arith.truncf %5 : vector<16x32xf32> to vector<16x32xbf16>
    %c0_5 = arith.constant 0 : index
    %c0_6 = arith.constant 0 : index
    %7 = vector.load %arg4[%c0_5, %c0_6] : memref<32x128xbf16, #tpu.memory_space<vmem>>, vector<32x128xbf16>
    %cst_7 = arith.constant dense<0.000000e+00> : vector<16x128xf32>
    %8 = tpu.matmul %6, %7, %cst_7 {dimension_numbers = #tpu.dot_dimension_numbers<[1], [0], [0], [1], [0, 0, 1, 1], [], []>} : vector<16x32xbf16>, vector<32x128xbf16>, vector<16x128xf32> -> vector<16x128xf32>
    %c0_8 = arith.constant 0 : index
    %c0_9 = arith.constant 0 : index
    %9 = vector.load %arg5[%c0_8, %c0_9] : memref<1x128xf32, #tpu.memory_space<vmem>>, vector<1x128xf32>
    %10 = vector.broadcast %9 : vector<1x128xf32> to vector<16x128xf32>
    %11 = arith.addf %8, %10 : vector<16x128xf32>
    %12 = tpu.iota {dimensions = array<i32: 1>} : vector<16x128xi32>
    %cst_10 = arith.constant dense<0xFF800000> : vector<16xf32>
    %13 = vector.multi_reduction <maximumf>, %11, %cst_10 [1] : vector<16x128xf32> to vector<16xf32>
    %14 = vector.shape_cast %13 : vector<16xf32> to vector<16x1xf32>
    %15 = vector.broadcast %14 : vector<16x1xf32> to vector<16x128xf32>
    %16 = arith.cmpf oeq, %11, %15 : vector<16x128xf32>
    %c128_i32 = arith.constant 128 : i32
    %17 = vector.broadcast %c128_i32 : i32 to vector<16x128xi32>
    %18 = arith.select %16, %12, %17 : vector<16x128xi1>, vector<16x128xi32>
    %cst_11 = arith.constant dense<2147483647> : vector<16xi32>
    %19 = vector.multi_reduction <minsi>, %18, %cst_11 [1] : vector<16x128xi32> to vector<16xi32>
    %20 = vector.shape_cast %19 : vector<16xi32> to vector<16x1xi32>
    %21 = vector.broadcast %20 : vector<16x1xi32> to vector<16x128xi32>
    %22 = arith.cmpi eq, %12, %21 : vector<16x128xi32>
    %cst_12 = arith.constant 1.000000e+00 : f32
    %cst_13 = arith.constant 0.000000e+00 : f32
    %23 = vector.broadcast %cst_12 : f32 to vector<16x128xf32>
    %24 = vector.broadcast %cst_13 : f32 to vector<16x128xf32>
    %25 = arith.select %22, %23, %24 : vector<16x128xi1>, vector<16x128xf32>
    %26 = arith.truncf %25 : vector<16x128xf32> to vector<16x128xbf16>
    %c0_14 = arith.constant 0 : index
    %c0_15 = arith.constant 0 : index
    %27 = vector.load %arg6[%c0_14, %c0_15] : memref<16x128xbf16, #tpu.memory_space<vmem>>, vector<16x128xbf16>
    tpu.vector_store %arg6[%c0_14, %c0_15], %26 {strides = array<i32>} : memref<16x128xbf16, #tpu.memory_space<vmem>>, vector<16x128xbf16>,
    return
  }
  func.func @transform_0(%arg0: i32) -> (i32, i32) {
    %c0_i32 = arith.constant 0 : i32
    %c0_i32_0 = arith.constant 0 : i32
    return %arg0, %c0_i32 : i32, i32
  }
  func.func @transform_1(%arg0: i32) -> (i32, i32) {
    %c0_i32 = arith.constant 0 : i32
    %c0_i32_0 = arith.constant 0 : i32
    return %arg0, %c0_i32 : i32, i32
  }
  func.func @transform_2(%arg0: i32) -> (i32, i32) {
    %c0_i32 = arith.constant 0 : i32
    %c0_i32_0 = arith.constant 0 : i32
    %c0_i32_1 = arith.constant 0 : i32
    return %c0_i32, %c0_i32_0 : i32, i32
  }
  func.func @transform_3(%arg0: i32) -> (i32, i32) {
    %c0_i32 = arith.constant 0 : i32
    %c0_i32_0 = arith.constant 0 : i32
    %c0_i32_1 = arith.constant 0 : i32
    return %c0_i32, %c0_i32_0 : i32, i32
  }
  func.func @transform_4(%arg0: i32) -> (i32, i32) {
    %c0_i32 = arith.constant 0 : i32
    %c0_i32_0 = arith.constant 0 : i32
    %c0_i32_1 = arith.constant 0 : i32
    return %c0_i32, %c0_i32_0 : i32, i32
  }
  func.func @transform_5(%arg0: i32) -> (i32, i32) {
    %c0_i32 = arith.constant 0 : i32
    %c0_i32_0 = arith.constant 0 : i32
    return %arg0, %c0_i32 : i32, i32
  }
}

</mosaic_0001>

<llo_original>
// kernel: tpu_custom_call.1
$region0: #{tpu_custom_call.1}
  #allocation0 [shape = 'u32[]', space=smem, size = 0x4, offset = 0x4, fixed_abs, tag = 'smem constant byte address 0x4 - core index']
  #allocation1 [shape = 'u32[72,128]{1,0:T(1,128)}', space=vmem, size = 0x9000, scoped, tag = 'internal scratch']
  %s0 = inlined_call_operand.vmem [shape: bf16[16,32], index: 0, kind: input, shape index: {}]
  %s1 = inlined_call_operand.vmem [shape: bf16[16,48], index: 1, kind: input, shape index: {}]
  %s2 = inlined_call_operand.vmem [shape: bf16[48,32], index: 2, kind: input, shape index: {}]
  %s3 = inlined_call_operand.vmem [shape: bf16[32,128], index: 3, kind: input, shape index: {}]
  %s4 = inlined_call_operand.vmem [shape: f32[1,128], index: 4, kind: input, shape index: {}]
  %s5 = inlined_call_operand.hbm [shape: bf16[16,128], index: 5, kind: output, shape index: {}]
  %s6 = sld [smem:[#allocation0]]
  $region30: #{tpu_custom_call.1} parent=0
    _
  %s8 = ssub.s32 1, %s6
  %s9 = scalar_select 0, %s8, %s6
  $region1: #{tpu_custom_call.1} parent=0
    #allocation2 [shape = 'u8[4096]{0}', space=vmem, size = 0x1000, scoped, tag = 'output window, operand 0, single buffered']
    #allocation3 [shape = 's32[1]{0}', space=sflag, size = 0x4, scoped, tag = 'scoped memory for tpu_custom_call.1']
    %10 = vsyncpa [#allocation3], 0
    // Predicated region
    $region2: #{tpu_custom_call.1} parent=1 // pred_check
      _
    $region3: #{tpu_custom_call.1} parent=1 // pred_check_branch
      %12 = sbr.rel (0) target = $region5
    $region4: #{tpu_custom_call.1} parent=1 // pred_region
      _
    $region5: #{tpu_custom_call.1} parent=1 // pred_fallthru
      _
    // Predicated region
    $region6: #{tpu_custom_call.1} parent=1 // pred_check
      _
    $region7: #{tpu_custom_call.1} parent=1 // pred_check_branch
      %14 = sbr.rel (0) target = $region9
    $region8: #{tpu_custom_call.1} parent=1 // pred_region
      _
    $region9: #{tpu_custom_call.1} parent=1 // pred_fallthru
      _
    // Predicated region
    $region10: #{tpu_custom_call.1} parent=1 // pred_check
      _
    $region11: #{tpu_custom_call.1} parent=1 // pred_check_branch
      %16 = sbr.rel (0) target = $region13
    $region12: #{tpu_custom_call.1} parent=1 // pred_region
      _
    $region13: #{tpu_custom_call.1} parent=1 // pred_fallthru
      _
    // Predicated region
    $region14: #{tpu_custom_call.1} parent=1 // pred_check
      _
    $region15: #{tpu_custom_call.1} parent=1 // pred_check_branch
      %18 = sbr.rel (0) target = $region17
    $region16: #{tpu_custom_call.1} parent=1 // pred_region
      _
    $region17: #{tpu_custom_call.1} parent=1 // pred_fallthru
      _
    // Predicated region
    $region18: #{tpu_custom_call.1} parent=1 // pred_check
      _
    $region19: #{tpu_custom_call.1} parent=1 // pred_check_branch
      %20 = sbr.rel (0) target = $region21
    $region20: #{tpu_custom_call.1} parent=1 // pred_region
      _
    $region21: #{tpu_custom_call.1} parent=1 // pred_fallthru
      _
    %v22 = vld [vmem:[%s1] sm:$0xf]
    %v23 = vld [vmem:[%s1 + $0x4] sm:$0xf]
    %v24 = vld [vmem:[%s2] sm:$0xf]
    %v25 = vld [vmem:[%s2 + $0x4] sm:$0xf]
    %v26 = vld [vmem:[%s2 + $0x8] sm:$0xf]
    %v27 = vld [vmem:[%s2 + $0xc] sm:$0xf]
    %v28 = vld [vmem:[%s2 + $0x10] sm:$0xf]
    %v29 = vld [vmem:[%s2 + $0x14] sm:$0xf]
    %v30 = vld [vmem:[%s0] sm:$0xf]
    %v31 = vld [vmem:[%s0 + $0x4] sm:$0xf]
    %v32 = vunpack.c.l.bf16 %v30
    %v33 = vunpack.c.l.bf16 %v31
    %v36 = vunpack.c.l.b16 %v22
    %v37 = vunpack.c.l.b16 %v23
    %v38 = vpack.c.b16 %v37, %v36
    %v45 = vunpack.c.l.b16 %v24
    %v46 = vunpack.c.l.b16 %v25
    %v47 = vunpack.c.l.b16 %v26
    %v48 = vunpack.c.l.b16 %v27
    %v49 = vunpack.c.l.b16 %v28
    %v50 = vunpack.c.l.b16 %v29
    %v51 = vpack.c.b16 %v46, %v45
    %v52 = vpack.c.b16 %v48, %v47
    %v53 = vpack.c.b16 %v50, %v49
    %vm57 = vcmask 392192
    %v59 = vsel %vm57, %v38, 0
    %61 = vmatpush.bf16.msra.mxu0 0
    %62 = vmatpush.bf16.msra.mxu0 0
    %63 = vmatpush.bf16.msra.mxu0 0
    %64 = vmatpush.bf16.msra.mxu0 0
    %65 = vmatpush.bf16.msra.mxu0 0
    %66 = vmatpush.bf16.msra.mxu0 %v53
    %67 = vmatpush.bf16.msra.mxu0 %v52
    %68 = vmatpush.bf16.msra.mxu0 %v51
    %69 = vmatmul.bf16.gmra.mxu0 %v59
    %v70 = vpop.f32.mrf.mxu0
    %v71 = vadd.f32 %v32, %v70
    %v72 = vpop.f32.mrf.mxu0
    %v73 = vadd.f32 %v33, %v72
    %74 = vdwg.mxu0
    %v75 = vpack.c.bf16 %v73, %v71
    %v76 = vld [vmem:[%s3] sm:$0xf]
    %v77 = vld [vmem:[%s3 + $0x4] sm:$0xf]
    %v78 = vld [vmem:[%s3 + $0x8] sm:$0xf]
    %v79 = vld [vmem:[%s3 + $0xc] sm:$0xf]
    %v80 = vld [vmem:[%s4] sm:$0x1]
    %v82 = vperm.slane %v80, 0
    %v88 = vunpack.c.l.b16 %v76
    %v89 = vunpack.c.l.b16 %v77
    %v90 = vunpack.c.l.b16 %v78
    %v91 = vunpack.c.l.b16 %v79
    %v92 = vpack.c.b16 %v89, %v88
    %v93 = vpack.c.b16 %v91, %v90
    %vm96 = vcmask 261120
    %v98 = vsel %vm96, %v75, 0
    %100 = vmatpush.bf16.msra.mxu0 0
    %101 = vmatpush.bf16.msra.mxu0 0
    %102 = vmatpush.bf16.msra.mxu0 0
    %103 = vmatpush.bf16.msra.mxu0 0
    %104 = vmatpush.bf16.msra.mxu0 0
    %105 = vmatpush.bf16.msra.mxu0 0
    %106 = vmatpush.bf16.msra.mxu0 %v93
    %107 = vmatpush.bf16.msra.mxu0 %v92
    %108 = vmatmul.bf16.gmra.mxu0 %v98
    %v109 = vpop.f32.mrf.mxu0
    %v110 = vadd.f32 %v82, %v109
    %v111 = vpop.f32.mrf.mxu0
    %v112 = vadd.f32 %v82, %v111
    %113 = vdwg.mxu0
    %v114 = vlaneseq
    %v115 = vand.u32 %v114, 127
    %116 = vmax.xlane.f32.xlu0 %v110
    %v117 = vpop.xlane.xlu0 %116
    %118 = vmax.xlane.f32.xlu0 %v112
    %v119 = vpop.xlane.xlu0 %118
    %vm120 = vcmp.eq.f32.partialorder %v110, %v117
    %vm121 = vcmp.eq.f32.partialorder %v112, %v119
    %v122 = vsel %vm120, %v115, 128
    %v123 = vsel %vm121, %v115, 128
    %v124 = vand.u32 %v122, 65535
    %v125 = vshra.s32 %v122, 16
    %v126 = vcvt.s32.f32 %v124
    %v127 = vcvt.s32.f32 %v125
    %128 = vmin.xlane.f32.xlu0 %v127
    %v129 = vpop.xlane.xlu0 %128
    %vm130 = vcmp.eq.f32.partialorder %v127, %v129
    %v131 = vsel %vm130, %v126, inf
    %132 = vmin.xlane.f32.xlu0 %v131
    %v133 = vpop.xlane.xlu0 %132
    %v134 = vcvt.f32.s32 %v133
    %v135 = vcvt.f32.s32 %v129
    %v136 = vshll.u32 %v135, 16
    %v137 = vadd.s32 %v136, %v134
    %v138 = vand.u32 %v123, 65535
    %v139 = vshra.s32 %v123, 16
    %v140 = vcvt.s32.f32 %v138
    %v141 = vcvt.s32.f32 %v139
    %142 = vmin.xlane.f32.xlu0 %v141
    %v143 = vpop.xlane.xlu0 %142
    %vm144 = vcmp.eq.f32.partialorder %v141, %v143
    %v145 = vsel %vm144, %v140, inf
    %146 = vmin.xlane.f32.xlu0 %v145
    %v147 = vpop.xlane.xlu0 %146
    %v148 = vcvt.f32.s32 %v147
    %v149 = vcvt.f32.s32 %v143
    %v150 = vshll.u32 %v149, 16
    %v151 = vadd.s32 %v150, %v148
    %vm152 = vcmp.eq.s32.totalorder %v115, %v137
    %vm153 = vcmp.eq.s32.totalorder %v115, %v151
    %v154 = vsel %vm152, 1.0, 0.0
    %v155 = vsel %vm153, 1.0, 0.0
    %v156 = vpack.c.bf16 %v154, %v154
    %v157 = vpack.c.bf16 %v155, %v155
    %158 = vst [vmem:[#allocation2] sm:$0xf] %v156
    %159 = vst [vmem:[#allocation2 + $0x4] sm:$0xf] %v157
    // Predicated region
    $region22: #{tpu_custom_call.1} parent=1 // pred_check
      _
    $region23: #{tpu_custom_call.1} parent=1 // pred_check_branch
      %161 = sbr.rel (0) target = $region25
    $region24: #{tpu_custom_call.1} parent=1 // pred_region
      %163 = vsyncadd [#allocation3], 0
      %s164 = sshll.u32 [#allocation2], 4
      %s165 = int_to_ptr.vmem [resolvable:$true] %s164
      %s166 = sshll.u32 %s5, 4
      %s167 = int_to_ptr.hbm [resolvable:$true] %s166
      %172 = dma.vmem_to_hbm [thread:$0]  %s165, 128, %s167, [#allocation3], 64, 64, 4
    $region25: #{tpu_custom_call.1} parent=1 // pred_fallthru
      _
    // Predicated region
    $region26: #{tpu_custom_call.1} parent=1 // pred_check
      _
    $region27: #{tpu_custom_call.1} parent=1 // pred_check_branch
      %174 = sbr.rel (0) target = $region29
    $region28: #{tpu_custom_call.1} parent=1 // pred_region
      %176 = dma.done [#allocation3], 128
    $region29: #{tpu_custom_call.1} parent=1 // pred_fallthru
      _
    %177 = vsyncpa [#allocation3], 1

</llo_original>
